<compile_context>
chip_gen: v7x
topology: tpu7x:2x2x1
jax: 0.10.0
libtpu: 0.0.40
codegen_flags: <defaults>
</compile_context>

<pallas_src>
import jax
import jax.numpy as jnp
from jax import lax
from jax.experimental import pallas as pl
from jax.experimental.pallas import tpu as pltpu


def _vmem_limit_bytes():
    """Per-generation VMEM ceiling: ~48 MiB on v7x (64 MiB physical per TC),
    up to ~96 MiB on v5e/v6e (128 MiB physical)."""
    try:
        cap = int(pltpu.get_tpu_info().vmem_capacity_bytes)
    except Exception:  # conservative fallback that is safe on every generation
        cap = 64 * 1024 * 1024
    return max(min((cap * 3) // 4, 96 * 1024 * 1024), 32 * 1024 * 1024)


def _pick_gate_tile(S, D, itemsize, vmem_limit):
    """Token tile for the two gating kernels (multiple of 32, or full S)."""
    budget = vmem_limit // 3
    for ta in (512, 256, 128, 64, 32):
        if S % ta:
            continue
        # x double-buffer + bf16 tri + headroom for masks/locs
        approx = 2 * ta * D * itemsize + 4 * ta * ta
        if approx <= budget:
            return ta
    return S


def _pick_combine_tiles(S, P, cw_itemsize, vmem_limit):
    """Tiles for the (S, E*C) combine/dispatch streams.  Prefers an even number
    of token tiles (balanced megacore split on v7x), then the largest lane-dense
    tile that keeps the double-buffered outputs inside ~half the VMEM limit
    (bigger tiles = fewer 0.35us grid steps; v5e/v6e get bigger tiles since the
    limit there is larger)."""
    ts_cands = [c for c in (1024, 512, 256, 128, 64, 32) if S % c == 0] or [S]
    tp_cands = [c for c in (8192, 4096, 2048, 1024, 512, 256, 128) if P % c == 0] or [P]
    budget_elems = (vmem_limit // 2) // (2 * (cw_itemsize + 1))
    best_key, best_ts, best_tp = None, min(ts_cands), min(tp_cands)
    for ts in ts_cands:
        for tp in tp_cands:
            if ts * tp > budget_elems:
                continue
            key = ((S // ts) % 2 == 0, ts * tp, tp)
            if best_key is None or key > best_key:
                best_key, best_ts, best_tp = key, ts, tp
    return best_ts, best_tp


@jax.jit
def top2gate(x, w, key):
    """x: (S, D), w: (D, E) (= wg.weight.T).  Returns
    (l_aux, combine_weights (S, E, 2S) in x.dtype, dispatch_mask (S, E, 2S) bool)."""
    S, D = x.shape
    E = w.shape[1]
    C = 2 * S                  # capacity, exactly as written in the module
    P = E * C                  # flattened (expert, capacity) axis

    gumbel = jax.random.gumbel(key, (S, E), dtype=jnp.float32)
    vmem_limit = _vmem_limit_bytes()

    TA = _pick_gate_tile(S, D, x.dtype.itemsize, vmem_limit)
    NT = S // TA
    eps = float(jnp.finfo(jnp.float32).eps)

    # ---------------- Kernel A1: logits + global stats (blocked, carried) ----
    def gate_stats_kernel(x_ref, w_ref, logits_ref, cnt1_ref, laux_ref,
                          cnt_sc, gsum_sc):
        t = pl.program_id(0)
        lg = jnp.dot(x_ref[...], w_ref[...],
                     preferred_element_type=jnp.float32).astype(logits_ref.dtype)
        logits_ref[...] = lg

        lf = lg.astype(jnp.float32)
        mx = jnp.max(lf, axis=1, keepdims=True)
        ex = jnp.exp(lf - mx)
        gates = ex / jnp.sum(ex, axis=1, keepdims=True)   # exact divide (l_aux parity)

        col = lax.broadcasted_iota(jnp.int32, (TA, E), 1)
        max1 = jnp.max(gates, axis=1, keepdims=True)
        idx1 = jnp.min(jnp.where(gates == max1, col, E), axis=1, keepdims=True)
        mask1 = (col == idx1).astype(jnp.float32)

        @pl.when(t == 0)
        def _():
            cnt_sc[...] = jnp.zeros_like(cnt_sc)
            gsum_sc[...] = jnp.zeros_like(gsum_sc)

        cnt_sc[...] += jnp.sum(mask1, axis=0, keepdims=True)
        gsum_sc[...] += jnp.sum(gates, axis=0, keepdims=True)

        @pl.when(t == NT - 1)
        def _():
            cnt1_ref[...] = cnt_sc[...]
            me = gsum_sc[...] * (1.0 / S)
            ce = cnt_sc[...] * (1.0 / S)
            laux_ref[...] = jnp.mean(me * ce, axis=1, keepdims=True)

    logits, cnt1, laux = pl.pallas_call(
        gate_stats_kernel,
        out_shape=(
            jax.ShapeDtypeStruct((S, E), x.dtype),
            jax.ShapeDtypeStruct((1, E), jnp.float32),
            jax.ShapeDtypeStruct((1, 1), jnp.float32),
        ),
        grid=(NT,),
        in_specs=[
            pl.BlockSpec((TA, D), lambda t: (t, 0)),
            pl.BlockSpec((D, E), lambda t: (0, 0)),
        ],
        out_specs=(
            pl.BlockSpec((TA, E), lambda t: (t, 0)),
            pl.BlockSpec((1, E), lambda t: (0, 0)),
            pl.BlockSpec((1, 1), lambda t: (0, 0)),
        ),
        scratch_shapes=[pltpu.VMEM((1, E), jnp.float32),
                        pltpu.VMEM((1, E), jnp.float32)],
        compiler_params=pltpu.CompilerParams(
            dimension_semantics=("arbitrary",),
            vmem_limit_bytes=vmem_limit),
    )(x, w)

    # ------------- Kernel A2: blocked cumsum + per-token descriptors ---------
    def gate_locs_kernel(logits_ref, gumbel_ref, cnt1_ref,
                         gdesc_ref, pdesc_ref, run_sc):
        t = pl.program_id(0)
        lf = logits_ref[...].astype(jnp.float32)
        cnt1 = cnt1_ref[...]                                   # (1, E) global counts

        mx = jnp.max(lf, axis=1, keepdims=True)
        ex = jnp.exp(lf - mx)
        gates = ex / jnp.sum(ex, axis=1, keepdims=True)

        col = lax.broadcasted_iota(jnp.int32, (TA, E), 1)
        max1 = jnp.max(gates, axis=1, keepdims=True)           # local max -> safe ties
        idx1 = jnp.min(jnp.where(gates == max1, col, E), axis=1, keepdims=True)
        mask1b = col == idx1
        mask1 = mask1b.astype(jnp.float32)

        except1 = jnp.where(mask1b, -jnp.inf, lf + gumbel_ref[...])
        max2 = jnp.max(except1, axis=1, keepdims=True)
        idx2 = jnp.min(jnp.where(except1 == max2, col, E), axis=1, keepdims=True)
        mask2 = (col == idx2).astype(jnp.float32)

        @pl.when(t == 0)
        def _():
            run_sc[...] = jnp.zeros_like(run_sc)

        # Within-tile token cumsum of [mask1 | mask2] with one (TA,TA) bf16 MXU
        # matmul (0/1 values are exact in bf16, accumulation is f32); the
        # (1, 2E) running count carried in run_sc extends it across tiles.
        # TODO(synk): the 2E columns use only a sliver of the 256-wide MXU; if
        # this pass ever shows in a profile, pack more per-token reductions into
        # the same RHS instead of issuing separate ones.
        col2 = lax.broadcasted_iota(jnp.int32, (TA, 2 * E), 1)
        mask_both = jnp.logical_or(col2 == idx1, col2 == idx2 + E).astype(jnp.bfloat16)
        row_i = lax.broadcasted_iota(jnp.int32, (TA, TA), 0)
        col_i = lax.broadcasted_iota(jnp.int32, (TA, TA), 1)
        tri = (row_i >= col_i).astype(jnp.bfloat16)
        prev = run_sc[...]
        locs = (jnp.dot(tri, mask_both, preferred_element_type=jnp.float32)
                - 1.0 + prev)                                   # (TA, 2E)
        run_sc[...] = prev + jnp.sum(mask_both.astype(jnp.float32), axis=0,
                                     keepdims=True)

        locations1 = locs[:, :E]
        locations2 = locs[:, E:] + cnt1                         # + global sum(mask1)

        capf = jnp.float32(C)
        mask1c = mask1 * (locations1 < capf).astype(jnp.float32)
        mask2c = mask2 * (locations2 < capf).astype(jnp.float32)

        loc1_s = jnp.sum(locations1 * mask1c, axis=1, keepdims=True)
        loc2_s = jnp.sum(locations2 * mask2c, axis=1, keepdims=True)
        g1s = jnp.sum(gates * mask1c, axis=1, keepdims=True)
        g2s = jnp.sum(gates * mask2c, axis=1, keepdims=True)
        denom = jnp.maximum(g1s + g2s, eps)
        g1 = g1s / denom
        g2 = g2s / denom

        # flattened positions on the (E*C) combine axis, kept as exact int32
        p1 = idx1 * C + loc1_s.astype(jnp.int32)
        p2 = idx2 * C + loc2_s.astype(jnp.int32)

        col8 = lax.broadcasted_iota(jnp.int32, (TA, 8), 1)
        gdesc_ref[...] = jnp.where(col8 == 0, g1, 0.0) + jnp.where(col8 == 1, g2, 0.0)
        pdesc_ref[...] = jnp.where(col8 == 0, p1, 0) + jnp.where(col8 == 1, p2, 0)

    gdesc, pdesc = pl.pallas_call(
        gate_locs_kernel,
        out_shape=(
            jax.ShapeDtypeStruct((S, 8), jnp.float32),
            jax.ShapeDtypeStruct((S, 8), jnp.int32),
        ),
        grid=(NT,),
        in_specs=[
            pl.BlockSpec((TA, E), lambda t: (t, 0)),
            pl.BlockSpec((TA, E), lambda t: (t, 0)),
            pl.BlockSpec((1, E), lambda t: (0, 0)),
        ],
        out_specs=(
            pl.BlockSpec((TA, 8), lambda t: (t, 0)),
            pl.BlockSpec((TA, 8), lambda t: (t, 0)),
        ),
        scratch_shapes=[pltpu.VMEM((1, 2 * E), jnp.float32)],
        compiler_params=pltpu.CompilerParams(
            dimension_semantics=("arbitrary",),
            vmem_limit_bytes=vmem_limit),
    )(logits, gumbel, cnt1)

    # ------------- Kernel B: stream combine_weights / dispatch_mask ----------
    TS, TP = _pick_combine_tiles(S, P, x.dtype.itemsize, vmem_limit)
    lane = lax.broadcasted_iota(jnp.int32, (1, TP), 1)          # resident index row

    def combine_kernel(gdesc_ref, pdesc_ref, lane_ref, cw_ref, dm_ref):
        base = pl.program_id(1) * TP
        g1 = gdesc_ref[:, 0:1]
        g2 = gdesc_ref[:, 1:2]
        p1 = pdesc_ref[:, 0:1] - base              # per-row scalars, not per element
        p2 = pdesc_ref[:, 1:2] - base
        pos = lane_ref[...]                        # (1, TP), never regenerated
        eq1 = pos == p1
        eq2 = pos == p2
        cw = jnp.where(eq1, g1, jnp.where(eq2, g2, jnp.float32(0.0)))
        cw_ref[...] = cw.astype(cw_ref.dtype)
        dm_ref[...] = cw != 0.0                    # bool straight to HBM (no wrapper pass)

    cw2d, dm2d = pl.pallas_call(
        combine_kernel,
        out_shape=(
            jax.ShapeDtypeStruct((S, P), x.dtype),
            jax.ShapeDtypeStruct((S, P), jnp.bool_),
        ),
        grid=(S // TS, P // TP),
        in_specs=[
            pl.BlockSpec((TS, 8), lambda i, j: (i, 0)),
            pl.BlockSpec((TS, 8), lambda i, j: (i, 0)),
            pl.BlockSpec((1, TP), lambda i, j: (0, 0)),
        ],
        out_specs=(
            pl.BlockSpec((TS, TP), lambda i, j: (i, j)),
            pl.BlockSpec((TS, TP), lambda i, j: (i, j)),
        ),
        compiler_params=pltpu.CompilerParams(
            dimension_semantics=("parallel", "parallel"),
            vmem_limit_bytes=vmem_limit),
    )(gdesc, pdesc, lane)

    combine_weights = cw2d.reshape(S, E, C)        # free row-major split
    dispatch_mask = dm2d.reshape(S, E, C)          # already bool, no convert pass
    l_aux = laux[0, 0].astype(x.dtype)
    return l_aux, combine_weights, dispatch_mask


def _top2gate_reference(x, w, gumbel):
    """Pure-JAX port of the PyTorch top2gating (for correctness checking)."""
    S, _ = x.shape
    E = w.shape[1]
    C = 2 * S
    logits = jnp.dot(x, w, precision=jax.lax.Precision.HIGHEST)
    gates = jax.nn.softmax(logits.astype(jnp.float32), axis=1)
    idx1 = jnp.argmax(gates, axis=1)
    mask1 = jax.nn.one_hot(idx1, E, dtype=jnp.float32)
    noisy = logits.astype(jnp.float32) + gumbel
    except1 = jnp.where(mask1 > 0, -jnp.inf, noisy)
    idx2 = jnp.argmax(except1, axis=1)
    mask2 = jax.nn.one_hot(idx2, E, dtype=jnp.float32)
    loc1 = jnp.cumsum(mask1, axis=0) - 1.0
    loc2 = jnp.cumsum(mask2, axis=0) - 1.0 + jnp.sum(mask1, axis=0, keepdims=True)
    me = jnp.mean(gates, axis=0)
    ce = jnp.mean(mask1, axis=0)
    l_aux = jnp.mean(me * ce)
    mask1 = mask1 * (loc1 < C)
    mask2 = mask2 * (loc2 < C)
    loc1_s = jnp.sum(loc1 * mask1, axis=1)
    loc2_s = jnp.sum(loc2 * mask2, axis=1)
    g1s = jnp.sum(gates * mask1, axis=1)
    g2s = jnp.sum(gates * mask2, axis=1)
    denom = jnp.maximum(g1s + g2s, jnp.finfo(jnp.float32).eps)
    g1 = g1s / denom
    g2 = g2s / denom
    gates1 = g1[:, None] * mask1
    gates2 = g2[:, None] * mask2
    sc1 = jax.nn.one_hot(loc1_s.astype(jnp.int32), C, dtype=jnp.float32)
    sc2 = jax.nn.one_hot(loc2_s.astype(jnp.int32), C, dtype=jnp.float32)
    combine = (gates1[:, :, None] * sc1[:, None, :]
               + gates2[:, :, None] * sc2[:, None, :])
    dispatch = combine != 0.0
    return l_aux.astype(x.dtype), combine.astype(x.dtype), dispatch


if __name__ == "__main__":
    model_dim = 32
    num_experts = 4
    num_tokens = 8

    key = jax.random.PRNGKey(0)
    kx, kw, kg = jax.random.split(key, 3)

    # deterministic synthetic params (torch.nn.Linear(model_dim, num_experts, bias=False))
    bound = 1.0 / (model_dim ** 0.5)
    wg_weight = jax.random.uniform(kw, (num_experts, model_dim),
                                   minval=-bound, maxval=bound, dtype=jnp.float32)
    w = wg_weight.T                                   # (D, E)
    x = jax.random.normal(kx, (num_tokens, model_dim), dtype=jnp.float32)

    l_aux, combine_weights, dispatch_mask = top2gate(x, w, kg)
    jax.block_until_ready((l_aux, combine_weights, dispatch_mask))

    assert combine_weights.shape == (num_tokens, num_experts, 2 * num_tokens)
    assert combine_weights.dtype == x.dtype
    assert dispatch_mask.shape == (num_tokens, num_experts, 2 * num_tokens)
    assert dispatch_mask.dtype == jnp.bool_
    assert l_aux.shape == ()

    # every token is dispatched to exactly two (expert, slot) pairs and its
    # combine weights sum to 1 (capacity = 2*num_tokens never drops tokens).
    per_token = dispatch_mask.reshape(num_tokens, -1).sum(axis=1)
    assert bool(jnp.all(per_token == 2))
    sums = combine_weights.reshape(num_tokens, -1).sum(axis=1)
    assert bool(jnp.allclose(sums, 1.0, atol=1e-3))

    # compare against a pure-JAX port of the PyTorch reference (same gumbel draw)
    gumbel = jax.random.gumbel(kg, (num_tokens, num_experts), dtype=jnp.float32)
    ref_laux, ref_cw, ref_dm = _top2gate_reference(x, w, gumbel)
    assert bool(jnp.allclose(l_aux, ref_laux, atol=1e-5))
    assert bool(jnp.allclose(combine_weights, ref_cw, atol=2e-3))
    assert bool(jnp.array_equal(dispatch_mask, ref_dm))

    print("KERNEL_OK")
</pallas_src>

<mosaic_0001>
module attributes {stable_mosaic.version = 11 : i64} {
  func.func @gate_stats_kernel(%arg0: i32, %arg1: memref<8x32xf32, #tpu.memory_space<vmem>>, %arg2: memref<32x4xf32, #tpu.memory_space<vmem>>, %arg3: memref<8x4xf32, #tpu.memory_space<vmem>>, %arg4: memref<1x4xf32, #tpu.memory_space<vmem>>, %arg5: memref<1x1xf32, #tpu.memory_space<vmem>>, %arg6: memref<1x4xf32, #tpu.memory_space<vmem>>, %arg7: memref<1x4xf32, #tpu.memory_space<vmem>>) attributes {dimension_semantics = [#tpu.dimension_semantics<arbitrary>], iteration_bounds = array<i64: 1>, scalar_prefetch = 0 : i64, scratch_operands = 2 : i64, tpu.core_type = #tpu.core_type<tc>, window_params = [{transform_indices = @transform_0, window_bounds = array<i64: 8, 32>}, {pipeline_mode = #tpu.pipeline_mode<synchronous>, transform_indices = @transform_1, window_bounds = array<i64: 32, 4>}, {transform_indices = @transform_2, window_bounds = array<i64: 8, 4>}, {pipeline_mode = #tpu.pipeline_mode<synchronous>, transform_indices = @transform_3, window_bounds = array<i64: 1, 4>}, {pipeline_mode = #tpu.pipeline_mode<synchronous>, transform_indices = @transform_4, window_bounds = array<i64: 1, 1>}]} {
    %c0 = arith.constant 0 : index
    %c0_0 = arith.constant 0 : index
    %0 = vector.load %arg1[%c0, %c0_0] : memref<8x32xf32, #tpu.memory_space<vmem>>, vector<8x32xf32>
    %c0_1 = arith.constant 0 : index
    %c0_2 = arith.constant 0 : index
    %1 = vector.load %arg2[%c0_1, %c0_2] : memref<32x4xf32, #tpu.memory_space<vmem>>, vector<32x4xf32>
    %cst = arith.constant dense<0.000000e+00> : vector<8x4xf32>
    %2 = tpu.matmul %0, %1, %cst {dimension_numbers = #tpu.dot_dimension_numbers<[1], [0], [0], [1], [0, 0, 1, 1], [], []>} : vector<8x32xf32>, vector<32x4xf32>, vector<8x4xf32> -> vector<8x4xf32>
    %c0_3 = arith.constant 0 : index
    %c0_4 = arith.constant 0 : index
    %3 = vector.load %arg3[%c0_3, %c0_4] : memref<8x4xf32, #tpu.memory_space<vmem>>, vector<8x4xf32>
    tpu.vector_store %arg3[%c0_3, %c0_4], %2 {strides = array<i32>} : memref<8x4xf32, #tpu.memory_space<vmem>>, vector<8x4xf32>,
    %cst_5 = arith.constant dense<0xFF800000> : vector<8xf32>
    %4 = vector.multi_reduction <maximumf>, %2, %cst_5 [1] : vector<8x4xf32> to vector<8xf32>
    %5 = vector.shape_cast %4 : vector<8xf32> to vector<8x1xf32>
    %6 = vector.broadcast %5 : vector<8x1xf32> to vector<8x4xf32>
    %7 = arith.subf %2, %6 : vector<8x4xf32>
    %8 = math.exp %7 : vector<8x4xf32>
    %cst_6 = arith.constant dense<0.000000e+00> : vector<8xf32>
    %9 = vector.multi_reduction <add>, %8, %cst_6 [1] : vector<8x4xf32> to vector<8xf32>
    %10 = vector.shape_cast %9 : vector<8xf32> to vector<8x1xf32>
    %11 = vector.broadcast %10 : vector<8x1xf32> to vector<8x4xf32>
    %12 = arith.divf %8, %11 : vector<8x4xf32>
    %13 = tpu.iota {dimensions = array<i32: 1>} : vector<8x4xi32>
    %cst_7 = arith.constant dense<0xFF800000> : vector<8xf32>
    %14 = vector.multi_reduction <maximumf>, %12, %cst_7 [1] : vector<8x4xf32> to vector<8xf32>
    %15 = vector.shape_cast %14 : vector<8xf32> to vector<8x1xf32>
    %16 = vector.broadcast %15 : vector<8x1xf32> to vector<8x4xf32>
    %17 = arith.cmpf oeq, %12, %16 : vector<8x4xf32>
    %c4_i32 = arith.constant 4 : i32
    %18 = vector.broadcast %c4_i32 : i32 to vector<8x4xi32>
    %19 = arith.select %17, %13, %18 : vector<8x4xi1>, vector<8x4xi32>
    %cst_8 = arith.constant dense<2147483647> : vector<8xi32>
    %20 = vector.multi_reduction <minsi>, %19, %cst_8 [1] : vector<8x4xi32> to vector<8xi32>
    %21 = vector.shape_cast %20 : vector<8xi32> to vector<8x1xi32>
    %22 = vector.broadcast %21 : vector<8x1xi32> to vector<8x4xi32>
    %23 = arith.cmpi eq, %13, %22 : vector<8x4xi32>
    %24 = arith.extui %23 : vector<8x4xi1> to vector<8x4xi32>
    %25 = arith.sitofp %24 : vector<8x4xi32> to vector<8x4xf32>
    %c0_i32 = arith.constant 0 : i32
    %26 = arith.cmpi eq, %arg0, %c0_i32 : i32
    %27 = arith.extui %26 : i1 to i32
    %c0_i32_9 = arith.constant 0 : i32
    %28 = arith.cmpi ne, %27, %c0_i32_9 : i32
    scf.if %28 {
      %cst_22 = arith.constant 0.000000e+00 : f32
      %42 = vector.broadcast %cst_22 : f32 to vector<1x4xf32>
      %c0_23 = arith.constant 0 : index
      %c0_24 = arith.constant 0 : index
      %43 = vector.load %arg6[%c0_23, %c0_24] : memref<1x4xf32, #tpu.memory_space<vmem>>, vector<1x4xf32>
      tpu.vector_store %arg6[%c0_23, %c0_24], %42 {strides = array<i32>} : memref<1x4xf32, #tpu.memory_space<vmem>>, vector<1x4xf32>,
      %cst_25 = arith.constant 0.000000e+00 : f32
      %44 = vector.broadcast %cst_25 : f32 to vector<1x4xf32>
      %c0_26 = arith.constant 0 : index
      %c0_27 = arith.constant 0 : index
      %45 = vector.load %arg7[%c0_26, %c0_27] : memref<1x4xf32, #tpu.memory_space<vmem>>, vector<1x4xf32>
      tpu.vector_store %arg7[%c0_26, %c0_27], %44 {strides = array<i32>} : memref<1x4xf32, #tpu.memory_space<vmem>>, vector<1x4xf32>,
    } else {
    }
    %c0_10 = arith.constant 0 : index
    %c0_11 = arith.constant 0 : index
    %29 = vector.load %arg6[%c0_10, %c0_11] : memref<1x4xf32, #tpu.memory_space<vmem>>, vector<1x4xf32>
    %cst_12 = arith.constant dense<0.000000e+00> : vector<4xf32>
    %30 = vector.multi_reduction <add>, %25, %cst_12 [0] : vector<8x4xf32> to vector<4xf32>
    %31 = vector.shape_cast %30 : vector<4xf32> to vector<1x4xf32>
    %32 = arith.addf %29, %31 : vector<1x4xf32>
    %c0_13 = arith.constant 0 : index
    %c0_14 = arith.constant 0 : index
    %33 = vector.load %arg6[%c0_13, %c0_14] : memref<1x4xf32, #tpu.memory_space<vmem>>, vector<1x4xf32>
    tpu.vector_store %arg6[%c0_13, %c0_14], %32 {strides = array<i32>} : memref<1x4xf32, #tpu.memory_space<vmem>>, vector<1x4xf32>,
    %c0_15 = arith.constant 0 : index
    %c0_16 = arith.constant 0 : index
    %34 = vector.load %arg7[%c0_15, %c0_16] : memref<1x4xf32, #tpu.memory_space<vmem>>, vector<1x4xf32>
    %cst_17 = arith.constant dense<0.000000e+00> : vector<4xf32>
    %35 = vector.multi_reduction <add>, %12, %cst_17 [0] : vector<8x4xf32> to vector<4xf32>
    %36 = vector.shape_cast %35 : vector<4xf32> to vector<1x4xf32>
    %37 = arith.addf %34, %36 : vector<1x4xf32>
    %c0_18 = arith.constant 0 : index
    %c0_19 = arith.constant 0 : index
    %38 = vector.load %arg7[%c0_18, %c0_19] : memref<1x4xf32, #tpu.memory_space<vmem>>, vector<1x4xf32>
    tpu.vector_store %arg7[%c0_18, %c0_19], %37 {strides = array<i32>} : memref<1x4xf32, #tpu.memory_space<vmem>>, vector<1x4xf32>,
    %c0_i32_20 = arith.constant 0 : i32
    %39 = arith.cmpi eq, %arg0, %c0_i32_20 : i32
    %40 = arith.extui %39 : i1 to i32
    %c0_i32_21 = arith.constant 0 : i32
    %41 = arith.cmpi ne, %40, %c0_i32_21 : i32
    scf.if %41 {
      %c0_22 = arith.constant 0 : index
      %c0_23 = arith.constant 0 : index
      %42 = vector.load %arg6[%c0_22, %c0_23] : memref<1x4xf32, #tpu.memory_space<vmem>>, vector<1x4xf32>
      %c0_24 = arith.constant 0 : index
      %c0_25 = arith.constant 0 : index
      %43 = vector.load %arg4[%c0_24, %c0_25] : memref<1x4xf32, #tpu.memory_space<vmem>>, vector<1x4xf32>
      tpu.vector_store %arg4[%c0_24, %c0_25], %42 {strides = array<i32>} : memref<1x4xf32, #tpu.memory_space<vmem>>, vector<1x4xf32>,
      %c0_26 = arith.constant 0 : index
      %c0_27 = arith.constant 0 : index
      %44 = vector.load %arg7[%c0_26, %c0_27] : memref<1x4xf32, #tpu.memory_space<vmem>>, vector<1x4xf32>
      %cst_28 = arith.constant 1.250000e-01 : f32
      %45 = vector.broadcast %cst_28 : f32 to vector<1x4xf32>
      %46 = arith.mulf %44, %45 : vector<1x4xf32>
      %c0_29 = arith.constant 0 : index
      %c0_30 = arith.constant 0 : index
      %47 = vector.load %arg6[%c0_29, %c0_30] : memref<1x4xf32, #tpu.memory_space<vmem>>, vector<1x4xf32>
      %cst_31 = arith.constant 1.250000e-01 : f32
      %48 = vector.broadcast %cst_31 : f32 to vector<1x4xf32>
      %49 = arith.mulf %47, %48 : vector<1x4xf32>
      %50 = arith.mulf %46, %49 : vector<1x4xf32>
      %cst_32 = arith.constant dense<0.000000e+00> : vector<1xf32>
      %51 = vector.multi_reduction <add>, %50, %cst_32 [1] : vector<1x4xf32> to vector<1xf32>
      %52 = vector.shape_cast %51 : vector<1xf32> to vector<1x1xf32>
      %cst_33 = arith.constant 4.000000e+00 : f32
      %53 = vector.broadcast %cst_33 : f32 to vector<1x1xf32>
      %54 = arith.divf %52, %53 : vector<1x1xf32>
      %c0_34 = arith.constant 0 : index
      %c0_35 = arith.constant 0 : index
      %55 = vector.load %arg5[%c0_34, %c0_35] : memref<1x1xf32, #tpu.memory_space<vmem>>, vector<1x1xf32>
      tpu.vector_store %arg5[%c0_34, %c0_35], %54 {strides = array<i32>} : memref<1x1xf32, #tpu.memory_space<vmem>>, vector<1x1xf32>,
    } else {
    }
    return
  }
  func.func @transform_0(%arg0: i32) -> (i32, i32) {
    %c0_i32 = arith.constant 0 : i32
    %c0_i32_0 = arith.constant 0 : i32
    return %arg0, %c0_i32 : i32, i32
  }
  func.func @transform_1(%arg0: i32) -> (i32, i32) {
    %c0_i32 = arith.constant 0 : i32
    %c0_i32_0 = arith.constant 0 : i32
    %c0_i32_1 = arith.constant 0 : i32
    return %c0_i32, %c0_i32_0 : i32, i32
  }
  func.func @transform_2(%arg0: i32) -> (i32, i32) {
    %c0_i32 = arith.constant 0 : i32
    %c0_i32_0 = arith.constant 0 : i32
    return %arg0, %c0_i32 : i32, i32
  }
  func.func @transform_3(%arg0: i32) -> (i32, i32) {
    %c0_i32 = arith.constant 0 : i32
    %c0_i32_0 = arith.constant 0 : i32
    %c0_i32_1 = arith.constant 0 : i32
    return %c0_i32, %c0_i32_0 : i32, i32
  }
  func.func @transform_4(%arg0: i32) -> (i32, i32) {
    %c0_i32 = arith.constant 0 : i32
    %c0_i32_0 = arith.constant 0 : i32
    %c0_i32_1 = arith.constant 0 : i32
    return %c0_i32, %c0_i32_0 : i32, i32
  }
}

module attributes {stable_mosaic.version = 11 : i64} {
  func.func @combine_kernel(%arg0: i32, %arg1: i32, %arg2: memref<8x8xf32, #tpu.memory_space<vmem>>, %arg3: memref<8x8xi32, #tpu.memory_space<vmem>>, %arg4: memref<1x64xi32, #tpu.memory_space<vmem>>, %arg5: memref<8x64xf32, #tpu.memory_space<vmem>>, %arg6: memref<8x64xi32, #tpu.memory_space<vmem>>) attributes {dimension_semantics = [#tpu.dimension_semantics<parallel>, #tpu.dimension_semantics<parallel>], iteration_bounds = array<i64: 1, 1>, scalar_prefetch = 0 : i64, scratch_operands = 0 : i64, tpu.core_type = #tpu.core_type<tc>, window_params = [{transform_indices = @transform_0, window_bounds = array<i64: 8, 8>}, {transform_indices = @transform_1, window_bounds = array<i64: 8, 8>}, {pipeline_mode = #tpu.pipeline_mode<synchronous>, transform_indices = @transform_2, window_bounds = array<i64: 1, 64>}, {transform_indices = @transform_3, window_bounds = array<i64: 8, 64>}, {transform_indices = @transform_4, window_bounds = array<i64: 8, 64>}]} {
    %c64_i32 = arith.constant 64 : i32
    %0 = arith.muli %arg1, %c64_i32 : i32
    %c0 = arith.constant 0 : index
    %c0_0 = arith.constant 0 : index
    %1 = vector.load %arg2[%c0, %c0_0] : memref<8x8xf32, #tpu.memory_space<vmem>>, vector<8x1xf32>
    %c0_1 = arith.constant 0 : index
    %c1 = arith.constant 1 : index
    %2 = vector.load %arg2[%c0_1, %c1] : memref<8x8xf32, #tpu.memory_space<vmem>>, vector<8x1xf32>
    %c0_2 = arith.constant 0 : index
    %c0_3 = arith.constant 0 : index
    %3 = vector.load %arg3[%c0_2, %c0_3] : memref<8x8xi32, #tpu.memory_space<vmem>>, vector<8x1xi32>
    %4 = vector.broadcast %0 : i32 to vector<8x1xi32>
    %5 = arith.subi %3, %4 : vector<8x1xi32>
    %c0_4 = arith.constant 0 : index
    %c1_5 = arith.constant 1 : index
    %6 = vector.load %arg3[%c0_4, %c1_5] : memref<8x8xi32, #tpu.memory_space<vmem>>, vector<8x1xi32>
    %7 = vector.broadcast %0 : i32 to vector<8x1xi32>
    %8 = arith.subi %6, %7 : vector<8x1xi32>
    %c0_6 = arith.constant 0 : index
    %c0_7 = arith.constant 0 : index
    %9 = vector.load %arg4[%c0_6, %c0_7] : memref<1x64xi32, #tpu.memory_space<vmem>>, vector<1x64xi32>
    %10 = vector.broadcast %9 : vector<1x64xi32> to vector<8x64xi32>
    %11 = vector.broadcast %5 : vector<8x1xi32> to vector<8x64xi32>
    %12 = arith.cmpi eq, %10, %11 : vector<8x64xi32>
    %13 = vector.broadcast %9 : vector<1x64xi32> to vector<8x64xi32>
    %14 = vector.broadcast %8 : vector<8x1xi32> to vector<8x64xi32>
    %15 = arith.cmpi eq, %13, %14 : vector<8x64xi32>
    %cst = arith.constant 0.000000e+00 : f32
    %16 = vector.shape_cast %2 : vector<8x1xf32> to vector<8x1xf32>
    %17 = vector.broadcast %16 : vector<8x1xf32> to vector<8x64xf32>
    %18 = vector.broadcast %cst : f32 to vector<8x64xf32>
    %19 = arith.select %15, %17, %18 : vector<8x64xi1>, vector<8x64xf32>
    %20 = vector.shape_cast %1 : vector<8x1xf32> to vector<8x1xf32>
    %21 = vector.broadcast %20 : vector<8x1xf32> to vector<8x64xf32>
    %22 = arith.select %12, %21, %19 : vector<8x64xi1>, vector<8x64xf32>
    %c0_8 = arith.constant 0 : index
    %c0_9 = arith.constant 0 : index
    %23 = vector.load %arg5[%c0_8, %c0_9] : memref<8x64xf32, #tpu.memory_space<vmem>>, vector<8x64xf32>
    tpu.vector_store %arg5[%c0_8, %c0_9], %22 {strides = array<i32>} : memref<8x64xf32, #tpu.memory_space<vmem>>, vector<8x64xf32>,
    %cst_10 = arith.constant 0.000000e+00 : f32
    %24 = vector.broadcast %cst_10 : f32 to vector<8x64xf32>
    %25 = arith.cmpf one, %22, %24 : vector<8x64xf32>
    %c0_11 = arith.constant 0 : index
    %c0_12 = arith.constant 0 : index
    %26 = vector.load %arg6[%c0_11, %c0_12] : memref<8x64xi32, #tpu.memory_space<vmem>>, vector<8x64xi32>
    %27 = arith.extui %25 : vector<8x64xi1> to vector<8x64xi32>
    %cst_13 = arith.constant dense<0> : vector<8x64xi32>
    %28 = arith.cmpi ne, %26, %cst_13 : vector<8x64xi32>
    tpu.vector_store %arg6[%c0_11, %c0_12], %27 {strides = array<i32>} : memref<8x64xi32, #tpu.memory_space<vmem>>, vector<8x64xi32>,
    return
  }
  func.func @transform_0(%arg0: i32, %arg1: i32) -> (i32, i32) {
    %c0_i32 = arith.constant 0 : i32
    %c0_i32_0 = arith.constant 0 : i32
    return %arg0, %c0_i32 : i32, i32
  }
  func.func @transform_1(%arg0: i32, %arg1: i32) -> (i32, i32) {
    %c0_i32 = arith.constant 0 : i32
    %c0_i32_0 = arith.constant 0 : i32
    return %arg0, %c0_i32 : i32, i32
  }
  func.func @transform_2(%arg0: i32, %arg1: i32) -> (i32, i32) {
    %c0_i32 = arith.constant 0 : i32
    %c0_i32_0 = arith.constant 0 : i32
    %c0_i32_1 = arith.constant 0 : i32
    return %c0_i32, %c0_i32_0 : i32, i32
  }
  func.func @transform_3(%arg0: i32, %arg1: i32) -> (i32, i32) {
    %c0_i32 = arith.constant 0 : i32
    return %arg0, %arg1 : i32, i32
  }
  func.func @transform_4(%arg0: i32, %arg1: i32) -> (i32, i32) {
    %c0_i32 = arith.constant 0 : i32
    return %arg0, %arg1 : i32, i32
  }
}

module attributes {stable_mosaic.version = 11 : i64} {
  func.func @gate_locs_kernel(%arg0: i32, %arg1: memref<8x4xf32, #tpu.memory_space<vmem>>, %arg2: memref<8x4xf32, #tpu.memory_space<vmem>>, %arg3: memref<1x4xf32, #tpu.memory_space<vmem>>, %arg4: memref<8x8xf32, #tpu.memory_space<vmem>>, %arg5: memref<8x8xi32, #tpu.memory_space<vmem>>, %arg6: memref<1x8xf32, #tpu.memory_space<vmem>>) attributes {dimension_semantics = [#tpu.dimension_semantics<arbitrary>], iteration_bounds = array<i64: 1>, scalar_prefetch = 0 : i64, scratch_operands = 1 : i64, tpu.core_type = #tpu.core_type<tc>, window_params = [{transform_indices = @transform_0, window_bounds = array<i64: 8, 4>}, {transform_indices = @transform_1, window_bounds = array<i64: 8, 4>}, {pipeline_mode = #tpu.pipeline_mode<synchronous>, transform_indices = @transform_2, window_bounds = array<i64: 1, 4>}, {transform_indices = @transform_3, window_bounds = array<i64: 8, 8>}, {transform_indices = @transform_4, window_bounds = array<i64: 8, 8>}]} {
    %c0 = arith.constant 0 : index
    %c0_0 = arith.constant 0 : index
    %0 = vector.load %arg1[%c0, %c0_0] : memref<8x4xf32, #tpu.memory_space<vmem>>, vector<8x4xf32>
    %c0_1 = arith.constant 0 : index
    %c0_2 = arith.constant 0 : index
    %1 = vector.load %arg3[%c0_1, %c0_2] : memref<1x4xf32, #tpu.memory_space<vmem>>, vector<1x4xf32>
    %cst = arith.constant dense<0xFF800000> : vector<8xf32>
    %2 = vector.multi_reduction <maximumf>, %0, %cst [1] : vector<8x4xf32> to vector<8xf32>
    %3 = vector.shape_cast %2 : vector<8xf32> to vector<8x1xf32>
    %4 = vector.broadcast %3 : vector<8x1xf32> to vector<8x4xf32>
    %5 = arith.subf %0, %4 : vector<8x4xf32>
    %6 = math.exp %5 : vector<8x4xf32>
    %cst_3 = arith.constant dense<0.000000e+00> : vector<8xf32>
    %7 = vector.multi_reduction <add>, %6, %cst_3 [1] : vector<8x4xf32> to vector<8xf32>
    %8 = vector.shape_cast %7 : vector<8xf32> to vector<8x1xf32>
    %9 = vector.broadcast %8 : vector<8x1xf32> to vector<8x4xf32>
    %10 = arith.divf %6, %9 : vector<8x4xf32>
    %11 = tpu.iota {dimensions = array<i32: 1>} : vector<8x4xi32>
    %cst_4 = arith.constant dense<0xFF800000> : vector<8xf32>
    %12 = vector.multi_reduction <maximumf>, %10, %cst_4 [1] : vector<8x4xf32> to vector<8xf32>
    %13 = vector.shape_cast %12 : vector<8xf32> to vector<8x1xf32>
    %14 = vector.broadcast %13 : vector<8x1xf32> to vector<8x4xf32>
    %15 = arith.cmpf oeq, %10, %14 : vector<8x4xf32>
    %c4_i32 = arith.constant 4 : i32
    %16 = vector.broadcast %c4_i32 : i32 to vector<8x4xi32>
    %17 = arith.select %15, %11, %16 : vector<8x4xi1>, vector<8x4xi32>
    %cst_5 = arith.constant dense<2147483647> : vector<8xi32>
    %18 = vector.multi_reduction <minsi>, %17, %cst_5 [1] : vector<8x4xi32> to vector<8xi32>
    %19 = vector.shape_cast %18 : vector<8xi32> to vector<8x1xi32>
    %20 = vector.broadcast %19 : vector<8x1xi32> to vector<8x4xi32>
    %21 = arith.cmpi eq, %11, %20 : vector<8x4xi32>
    %22 = arith.extui %21 : vector<8x4xi1> to vector<8x4xi32>
    %23 = arith.sitofp %22 : vector<8x4xi32> to vector<8x4xf32>
    %c0_6 = arith.constant 0 : index
    %c0_7 = arith.constant 0 : index
    %24 = vector.load %arg2[%c0_6, %c0_7] : memref<8x4xf32, #tpu.memory_space<vmem>>, vector<8x4xf32>
    %25 = arith.addf %0, %24 : vector<8x4xf32>
    %cst_8 = arith.constant 0xFF800000 : f32
    %26 = vector.broadcast %cst_8 : f32 to vector<8x4xf32>
    %27 = arith.select %21, %26, %25 : vector<8x4xi1>, vector<8x4xf32>
    %cst_9 = arith.constant dense<0xFF800000> : vector<8xf32>
    %28 = vector.multi_reduction <maximumf>, %27, %cst_9 [1] : vector<8x4xf32> to vector<8xf32>
    %29 = vector.shape_cast %28 : vector<8xf32> to vector<8x1xf32>
    %30 = vector.broadcast %29 : vector<8x1xf32> to vector<8x4xf32>
    %31 = arith.cmpf oeq, %27, %30 : vector<8x4xf32>
    %c4_i32_10 = arith.constant 4 : i32
    %32 = vector.broadcast %c4_i32_10 : i32 to vector<8x4xi32>
    %33 = arith.select %31, %11, %32 : vector<8x4xi1>, vector<8x4xi32>
    %cst_11 = arith.constant dense<2147483647> : vector<8xi32>
    %34 = vector.multi_reduction <minsi>, %33, %cst_11 [1] : vector<8x4xi32> to vector<8xi32>
    %35 = vector.shape_cast %34 : vector<8xi32> to vector<8x1xi32>
    %36 = vector.broadcast %35 : vector<8x1xi32> to vector<8x4xi32>
    %37 = arith.cmpi eq, %11, %36 : vector<8x4xi32>
    %38 = arith.extui %37 : vector<8x4xi1> to vector<8x4xi32>
    %39 = arith.sitofp %38 : vector<8x4xi32> to vector<8x4xf32>
    %c0_i32 = arith.constant 0 : i32
    %40 = arith.cmpi eq, %arg0, %c0_i32 : i32
    %41 = arith.extui %40 : i1 to i32
    %c0_i32_12 = arith.constant 0 : i32
    %42 = arith.cmpi ne, %41, %c0_i32_12 : i32
    scf.if %42 {
      %cst_40 = arith.constant 0.000000e+00 : f32
      %139 = vector.broadcast %cst_40 : f32 to vector<1x8xf32>
      %c0_41 = arith.constant 0 : index
      %c0_42 = arith.constant 0 : index
      %140 = vector.load %arg6[%c0_41, %c0_42] : memref<1x8xf32, #tpu.memory_space<vmem>>, vector<1x8xf32>
      tpu.vector_store %arg6[%c0_41, %c0_42], %139 {strides = array<i32>} : memref<1x8xf32, #tpu.memory_space<vmem>>, vector<1x8xf32>,
    } else {
    }
    %43 = tpu.iota {dimensions = array<i32: 1>} : vector<8x8xi32>
    %44 = vector.broadcast %19 : vector<8x1xi32> to vector<8x8xi32>
    %45 = arith.cmpi eq, %43, %44 : vector<8x8xi32>
    %c4_i32_13 = arith.constant 4 : i32
    %46 = vector.broadcast %c4_i32_13 : i32 to vector<8x1xi32>
    %47 = arith.addi %35, %46 : vector<8x1xi32>
    %48 = vector.broadcast %47 : vector<8x1xi32> to vector<8x8xi32>
    %49 = arith.cmpi eq, %43, %48 : vector<8x8xi32>
    %50 = arith.ori %45, %49 : vector<8x8xi1>
    %51 = arith.extui %50 : vector<8x8xi1> to vector<8x8xi32>
    %52 = arith.sitofp %51 : vector<8x8xi32> to vector<8x8xf32>
    %53 = arith.truncf %52 : vector<8x8xf32> to vector<8x8xbf16>
    %54 = tpu.iota {dimensions = array<i32: 0>} : vector<8x8xi32>
    %55 = tpu.iota {dimensions = array<i32: 1>} : vector<8x8xi32>
    %56 = arith.cmpi sge, %54, %55 : vector<8x8xi32>
    %57 = arith.extui %56 : vector<8x8xi1> to vector<8x8xi32>
    %58 = arith.sitofp %57 : vector<8x8xi32> to vector<8x8xf32>
    %59 = arith.truncf %58 : vector<8x8xf32> to vector<8x8xbf16>
    %c0_14 = arith.constant 0 : index
    %c0_15 = arith.constant 0 : index
    %60 = vector.load %arg6[%c0_14, %c0_15] : memref<1x8xf32, #tpu.memory_space<vmem>>, vector<1x8xf32>
    %cst_16 = arith.constant dense<0.000000e+00> : vector<8x8xf32>
    %61 = tpu.matmul %59, %53, %cst_16 {dimension_numbers = #tpu.dot_dimension_numbers<[1], [0], [0], [1], [0, 0, 1, 1], [], []>} : vector<8x8xbf16>, vector<8x8xbf16>, vector<8x8xf32> -> vector<8x8xf32>
    %cst_17 = arith.constant 1.000000e+00 : f32
    %62 = vector.broadcast %cst_17 : f32 to vector<8x8xf32>
    %63 = arith.subf %61, %62 : vector<8x8xf32>
    %64 = vector.broadcast %60 : vector<1x8xf32> to vector<8x8xf32>
    %65 = arith.addf %63, %64 : vector<8x8xf32>
    %66 = arith.extf %53 : vector<8x8xbf16> to vector<8x8xf32>
    %cst_18 = arith.constant dense<0.000000e+00> : vector<8xf32>
    %67 = vector.multi_reduction <add>, %66, %cst_18 [0] : vector<8x8xf32> to vector<8xf32>
    %68 = vector.shape_cast %67 : vector<8xf32> to vector<1x8xf32>
    %69 = arith.addf %60, %68 : vector<1x8xf32>
    %c0_19 = arith.constant 0 : index
    %c0_20 = arith.constant 0 : index
    %70 = vector.load %arg6[%c0_19, %c0_20] : memref<1x8xf32, #tpu.memory_space<vmem>>, vector<1x8xf32>
    tpu.vector_store %arg6[%c0_19, %c0_20], %69 {strides = array<i32>} : memref<1x8xf32, #tpu.memory_space<vmem>>, vector<1x8xf32>,
    %71 = vector.extract_strided_slice %65 {offsets = [0, 0], sizes = [8, 4], strides = [1, 1]} : vector<8x8xf32> to vector<8x4xf32>
    %72 = vector.extract_strided_slice %65 {offsets = [0, 4], sizes = [8, 4], strides = [1, 1]} : vector<8x8xf32> to vector<8x4xf32>
    %73 = vector.broadcast %1 : vector<1x4xf32> to vector<8x4xf32>
    %74 = arith.addf %72, %73 : vector<8x4xf32>
    %cst_21 = arith.constant 1.600000e+01 : f32
    %75 = vector.broadcast %cst_21 : f32 to vector<8x4xf32>
    %76 = arith.cmpf olt, %71, %75 : vector<8x4xf32>
    %77 = arith.extui %76 : vector<8x4xi1> to vector<8x4xi32>
    %78 = arith.sitofp %77 : vector<8x4xi32> to vector<8x4xf32>
    %79 = arith.mulf %23, %78 : vector<8x4xf32>
    %cst_22 = arith.constant 1.600000e+01 : f32
    %80 = vector.broadcast %cst_22 : f32 to vector<8x4xf32>
    %81 = arith.cmpf olt, %74, %80 : vector<8x4xf32>
    %82 = arith.extui %81 : vector<8x4xi1> to vector<8x4xi32>
    %83 = arith.sitofp %82 : vector<8x4xi32> to vector<8x4xf32>
    %84 = arith.mulf %39, %83 : vector<8x4xf32>
    %85 = arith.mulf %71, %79 : vector<8x4xf32>
    %cst_23 = arith.constant dense<0.000000e+00> : vector<8xf32>
    %86 = vector.multi_reduction <add>, %85, %cst_23 [1] : vector<8x4xf32> to vector<8xf32>
    %87 = vector.shape_cast %86 : vector<8xf32> to vector<8x1xf32>
    %88 = arith.mulf %74, %84 : vector<8x4xf32>
    %cst_24 = arith.constant dense<0.000000e+00> : vector<8xf32>
    %89 = vector.multi_reduction <add>, %88, %cst_24 [1] : vector<8x4xf32> to vector<8xf32>
    %90 = vector.shape_cast %89 : vector<8xf32> to vector<8x1xf32>
    %91 = arith.mulf %10, %79 : vector<8x4xf32>
    %cst_25 = arith.constant dense<0.000000e+00> : vector<8xf32>
    %92 = vector.multi_reduction <add>, %91, %cst_25 [1] : vector<8x4xf32> to vector<8xf32>
    %93 = vector.shape_cast %92 : vector<8xf32> to vector<8x1xf32>
    %94 = arith.mulf %10, %84 : vector<8x4xf32>
    %cst_26 = arith.constant dense<0.000000e+00> : vector<8xf32>
    %95 = vector.multi_reduction <add>, %94, %cst_26 [1] : vector<8x4xf32> to vector<8xf32>
    %96 = vector.shape_cast %95 : vector<8xf32> to vector<8x1xf32>
    %97 = arith.addf %93, %96 : vector<8x1xf32>
    %cst_27 = arith.constant 1.1920929E-7 : f32
    %98 = vector.broadcast %cst_27 : f32 to vector<8x1xf32>
    %99 = arith.maximumf %97, %98 : vector<8x1xf32>
    %100 = arith.divf %93, %99 : vector<8x1xf32>
    %101 = arith.divf %96, %99 : vector<8x1xf32>
    %c16_i32 = arith.constant 16 : i32
    %102 = vector.broadcast %c16_i32 : i32 to vector<8x1xi32>
    %103 = arith.muli %19, %102 : vector<8x1xi32>
    %104 = arith.fptosi %87 : vector<8x1xf32> to vector<8x1xi32>
    %105 = arith.addi %103, %104 : vector<8x1xi32>
    %c16_i32_28 = arith.constant 16 : i32
    %106 = vector.broadcast %c16_i32_28 : i32 to vector<8x1xi32>
    %107 = arith.muli %35, %106 : vector<8x1xi32>
    %108 = arith.fptosi %90 : vector<8x1xf32> to vector<8x1xi32>
    %109 = arith.addi %107, %108 : vector<8x1xi32>
    %110 = tpu.iota {dimensions = array<i32: 1>} : vector<8x8xi32>
    %c0_i32_29 = arith.constant 0 : i32
    %111 = vector.broadcast %c0_i32_29 : i32 to vector<8x8xi32>
    %112 = arith.cmpi eq, %110, %111 : vector<8x8xi32>
    %cst_30 = arith.constant 0.000000e+00 : f32
    %113 = vector.shape_cast %100 : vector<8x1xf32> to vector<8x1xf32>
    %114 = vector.broadcast %113 : vector<8x1xf32> to vector<8x8xf32>
    %115 = vector.broadcast %cst_30 : f32 to vector<8x8xf32>
    %116 = arith.select %112, %114, %115 : vector<8x8xi1>, vector<8x8xf32>
    %c1_i32 = arith.constant 1 : i32
    %117 = vector.broadcast %c1_i32 : i32 to vector<8x8xi32>
    %118 = arith.cmpi eq, %110, %117 : vector<8x8xi32>
    %cst_31 = arith.constant 0.000000e+00 : f32
    %119 = vector.shape_cast %101 : vector<8x1xf32> to vector<8x1xf32>
    %120 = vector.broadcast %119 : vector<8x1xf32> to vector<8x8xf32>
    %121 = vector.broadcast %cst_31 : f32 to vector<8x8xf32>
    %122 = arith.select %118, %120, %121 : vector<8x8xi1>, vector<8x8xf32>
    %123 = arith.addf %116, %122 : vector<8x8xf32>
    %c0_32 = arith.constant 0 : index
    %c0_33 = arith.constant 0 : index
    %124 = vector.load %arg4[%c0_32, %c0_33] : memref<8x8xf32, #tpu.memory_space<vmem>>, vector<8x8xf32>
    tpu.vector_store %arg4[%c0_32, %c0_33], %123 {strides = array<i32>} : memref<8x8xf32, #tpu.memory_space<vmem>>, vector<8x8xf32>,
    %c0_i32_34 = arith.constant 0 : i32
    %125 = vector.broadcast %c0_i32_34 : i32 to vector<8x8xi32>
    %126 = arith.cmpi eq, %110, %125 : vector<8x8xi32>
    %c0_i32_35 = arith.constant 0 : i32
    %127 = vector.shape_cast %105 : vector<8x1xi32> to vector<8x1xi32>
    %128 = vector.broadcast %127 : vector<8x1xi32> to vector<8x8xi32>
    %129 = vector.broadcast %c0_i32_35 : i32 to vector<8x8xi32>
    %130 = arith.select %126, %128, %129 : vector<8x8xi1>, vector<8x8xi32>
    %c1_i32_36 = arith.constant 1 : i32
    %131 = vector.broadcast %c1_i32_36 : i32 to vector<8x8xi32>
    %132 = arith.cmpi eq, %110, %131 : vector<8x8xi32>
    %c0_i32_37 = arith.constant 0 : i32
    %133 = vector.shape_cast %109 : vector<8x1xi32> to vector<8x1xi32>
    %134 = vector.broadcast %133 : vector<8x1xi32> to vector<8x8xi32>
    %135 = vector.broadcast %c0_i32_37 : i32 to vector<8x8xi32>
    %136 = arith.select %132, %134, %135 : vector<8x8xi1>, vector<8x8xi32>
    %137 = arith.addi %130, %136 : vector<8x8xi32>
    %c0_38 = arith.constant 0 : index
    %c0_39 = arith.constant 0 : index
    %138 = vector.load %arg5[%c0_38, %c0_39] : memref<8x8xi32, #tpu.memory_space<vmem>>, vector<8x8xi32>
    tpu.vector_store %arg5[%c0_38, %c0_39], %137 {strides = array<i32>} : memref<8x8xi32, #tpu.memory_space<vmem>>, vector<8x8xi32>,
    return
  }
  func.func @transform_0(%arg0: i32) -> (i32, i32) {
    %c0_i32 = arith.constant 0 : i32
    %c0_i32_0 = arith.constant 0 : i32
    return %arg0, %c0_i32 : i32, i32
  }
  func.func @transform_1(%arg0: i32) -> (i32, i32) {
    %c0_i32 = arith.constant 0 : i32
    %c0_i32_0 = arith.constant 0 : i32
    return %arg0, %c0_i32 : i32, i32
  }
  func.func @transform_2(%arg0: i32) -> (i32, i32) {
    %c0_i32 = arith.constant 0 : i32
    %c0_i32_0 = arith.constant 0 : i32
    %c0_i32_1 = arith.constant 0 : i32
    return %c0_i32, %c0_i32_0 : i32, i32
  }
  func.func @transform_3(%arg0: i32) -> (i32, i32) {
    %c0_i32 = arith.constant 0 : i32
    %c0_i32_0 = arith.constant 0 : i32
    return %arg0, %c0_i32 : i32, i32
  }
  func.func @transform_4(%arg0: i32) -> (i32, i32) {
    %c0_i32 = arith.constant 0 : i32
    %c0_i32_0 = arith.constant 0 : i32
    return %arg0, %c0_i32 : i32, i32
  }
}

</mosaic_0001>

<llo_original>
// kernel: top2gate.5
$region0: #{top2gate.5}
  #allocation0 [shape = 'u32[]', space=smem, size = 0x4, offset = 0x4, fixed_abs, tag = 'smem constant byte address 0x4 - core index']
  #allocation1 [shape = 'u32[144,128]{1,0:T(1,128)}', space=vmem, size = 0x12000, scoped, tag = 'internal scratch']
  %s0 = inlined_call_operand.vmem [shape: f32[8,8], index: 0, kind: input, shape index: {}]
  %s1 = inlined_call_operand.vmem [shape: s32[8,8], index: 1, kind: input, shape index: {}]
  %s2 = inlined_call_operand.vmem [shape: s32[1,64], index: 2, kind: input, shape index: {}]
  %s3 = inlined_call_operand.vmem [shape: f32[8,64], index: 3, kind: output, shape index: {0}]
  %s4 = inlined_call_operand.vmem [shape: s32[8,64], index: 4, kind: output, shape index: {1}]
  %5 = xla_tuple %s3, %s4
  %s6 = sld [smem:[#allocation0]]
  $region30: #{top2gate.5} parent=0
    _
  %s8 = ssub.s32 1, %s6
  %s9 = scalar_select 0, %s8, %s6
  // Predicated region
  $region2: #{top2gate.5} parent=0 // pred_check
    _
  $region3: #{top2gate.5} parent=0 // pred_check_branch
    %11 = sbr.rel (0) target = $region5
  $region4: #{top2gate.5} parent=0 // pred_region
    _
  $region5: #{top2gate.5} parent=0 // pred_fallthru
    _
  // Predicated region
  $region6: #{top2gate.5} parent=0 // pred_check
    _
  $region7: #{top2gate.5} parent=0 // pred_check_branch
    %13 = sbr.rel (0) target = $region9
  $region8: #{top2gate.5} parent=0 // pred_region
    _
  $region9: #{top2gate.5} parent=0 // pred_fallthru
    _
  // Predicated region
  $region10: #{top2gate.5} parent=0 // pred_check
    _
  $region11: #{top2gate.5} parent=0 // pred_check_branch
    %15 = sbr.rel (0) target = $region13
  $region12: #{top2gate.5} parent=0 // pred_region
    _
  $region13: #{top2gate.5} parent=0 // pred_fallthru
    _
  %s16 = smul.u32 0, 64
  %v17 = vld [vmem:[%s0] sm:$0xff]
  %v18 = vld [vmem:[%s1] sm:$0xff]
  %v19 = vstv %s16
  %v20 = vsub.s32 %v18, %v19
  %v21 = vld [vmem:[%s2] sm:$0x1]
  %v22 = vlaneseq
  %v23 = vshrl.u32 %v22, 7
  %v24 = vsub.s32 0, %v23
  %v25 = vrot.slane %v21, %v24
  %26 = vset.pattern.permute.xlu0 0
  %27 = vperm.xlu0 %26, %v20
  %v28 = vpop.permute.xlu0 %27
  %vm29 = vcmp.eq.s32.totalorder %v25, %v28
  %30 = vset.pattern.permute.xlu0 1
  %31 = vperm.xlu0 %30, %v20
  %v32 = vpop.permute.xlu0 %31
  %vm33 = vcmp.eq.s32.totalorder %v25, %v32
  %35 = vset.pattern.permute.xlu0 1
  %36 = vperm.xlu0 %35, %v17
  %v37 = vpop.permute.xlu0 %36
  %v39 = vsel %vm33, %v37, 0.0
  %40 = vset.pattern.permute.xlu0 0
  %41 = vperm.xlu0 %40, %v17
  %v42 = vpop.permute.xlu0 %41
  %v44 = vsel %vm29, %v42, %v39
  %vm45 = vcmask 523264
  %46 = vst.msk [vmem:[%s3] sm:$0xff] %vm45, %v44
  %vm47 = vcmp.ne.f32.partialorder %v44, 0.0
  %v48 = vsel %vm47, 1, 0
  %49 = vst.msk [vmem:[%s4] sm:$0xff] %vm45, %v48
  // Predicated region
  $region14: #{top2gate.5} parent=0 // pred_check
    _
  $region15: #{top2gate.5} parent=0 // pred_check_branch
    %51 = sbr.rel (0) target = $region17
  $region16: #{top2gate.5} parent=0 // pred_region
    _
  $region17: #{top2gate.5} parent=0 // pred_fallthru
    _
  // Predicated region
  $region18: #{top2gate.5} parent=0 // pred_check
    _
  $region19: #{top2gate.5} parent=0 // pred_check_branch
    %53 = sbr.rel (0) target = $region21
  $region20: #{top2gate.5} parent=0 // pred_region
    _
  $region21: #{top2gate.5} parent=0 // pred_fallthru
    _
  // Predicated region
  $region22: #{top2gate.5} parent=0 // pred_check
    _
  $region23: #{top2gate.5} parent=0 // pred_check_branch
    %55 = sbr.rel (0) target = $region25
  $region24: #{top2gate.5} parent=0 // pred_region
    _
  $region25: #{top2gate.5} parent=0 // pred_fallthru
    _
  // Predicated region
  $region26: #{top2gate.5} parent=0 // pred_check
    _
  $region27: #{top2gate.5} parent=0 // pred_check_branch
    %57 = sbr.rel (0) target = $region29
  $region28: #{top2gate.5} parent=0 // pred_region
    _
  $region29: #{top2gate.5} parent=0 // pred_fallthru
    _

// kernel: top2gate.3
$region0: #{top2gate.3}
  #allocation0 [shape = 'u32[]', space=smem, size = 0x4, offset = 0x4, fixed_abs, tag = 'smem constant byte address 0x4 - core index']
  #allocation1 [shape = 'u32[144,128]{1,0:T(1,128)}', space=vmem, size = 0x12000, scoped, tag = 'internal scratch']
  #allocation2 [shape = 'f32[1,4]{1,0:T(1,128)}', space=vmem, size = 0x200, scoped, tag = 'scratch operand']
  #allocation3 [shape = 'f32[1,4]{1,0:T(1,128)}', space=vmem, size = 0x200, scoped, tag = 'scratch operand']
  %s0 = inlined_call_operand.vmem [shape: f32[8,32], index: 0, kind: input, shape index: {}]
  %s1 = inlined_call_operand.vmem [shape: f32[32,4], index: 1, kind: input, shape index: {}]
  %s2 = inlined_call_operand.vmem [shape: f32[8,4], index: 2, kind: output, shape index: {0}]
  %s3 = inlined_call_operand.vmem [shape: f32[1,4], index: 3, kind: output, shape index: {1}]
  %s4 = inlined_call_operand.hbm [shape: f32[1,1], index: 4, kind: output, shape index: {2}]
  %5 = xla_tuple %s2, %s3, %s4
  %s6 = sld [smem:[#allocation0]]
  $region42: #{top2gate.3} parent=0
    _
  %s8 = ssub.s32 1, %s6
  %s9 = scalar_select 0, %s8, %s6
  $region1: #{top2gate.3} parent=0
    #allocation4 [shape = 'u8[512]{0}', space=vmem, size = 0x400, scoped, tag = 'output window, operand 2, single buffered']
    #allocation5 [shape = 's32[1]{0}', space=sflag, size = 0x4, scoped, tag = 'scoped memory for top2gate.3']
    %10 = vsyncpa [#allocation5], 0
    // Predicated region
    $region2: #{top2gate.3} parent=1 // pred_check
      _
    $region3: #{top2gate.3} parent=1 // pred_check_branch
      %12 = sbr.rel (0) target = $region5
    $region4: #{top2gate.3} parent=1 // pred_region
      _
    $region5: #{top2gate.3} parent=1 // pred_fallthru
      _
    // Predicated region
    $region6: #{top2gate.3} parent=1 // pred_check
      _
    $region7: #{top2gate.3} parent=1 // pred_check_branch
      %14 = sbr.rel (0) target = $region9
    $region8: #{top2gate.3} parent=1 // pred_region
      _
    $region9: #{top2gate.3} parent=1 // pred_fallthru
      _
    %v15 = vld [vmem:[%s0] sm:$0xff]
    %v16 = vld [vmem:[%s1] sm:$0xff]
    %v17 = vld [vmem:[%s1 + $0x8] sm:$0xff]
    %v18 = vld [vmem:[%s1 + $0x10] sm:$0xff]
    %v19 = vld [vmem:[%s1 + $0x18] sm:$0xff]
    %vm20 = vcmask 261120
    %v22 = vsel %vm20, %v15, 0
    %24 = vmatprep.subr.mxu0 0.0
    %25 = vmatpush1.msra.mxu0 %v16
    %26 = vmatprep.subr.mxu0 0.0
    %27 = vmatpush1.msra.mxu0 %v17
    %28 = vmatprep.subr.mxu0 0.0
    %29 = vmatpush1.msra.mxu0 %v18
    %30 = vmatprep.subr.mxu0 0.0
    %31 = vmatpush1.msra.mxu0 %v19
    %32 = vmatprep.subr.mxu0 0.0
    %33 = vmatpush1.msra.mxu0 0.0
    %34 = vmatprep.subr.mxu0 0.0
    %35 = vmatpush1.msra.mxu0 0.0
    %36 = vmatprep.subr.mxu0 0.0
    %37 = vmatpush1.msra.mxu0 0.0
    %38 = vmatprep.subr.mxu0 0.0
    %39 = vmatpush1.msra.mxu0 0.0
    %40 = vmatprep.subr.mxu0 0.0
    %41 = vmatpush1.msra.mxu0 0.0
    %42 = vmatprep.subr.mxu0 0.0
    %43 = vmatpush1.msra.mxu0 0.0
    %44 = vmatprep.subr.mxu0 0.0
    %45 = vmatpush1.msra.mxu0 0.0
    %46 = vmatprep.subr.mxu0 0.0
    %47 = vmatpush1.msra.mxu0 0.0
    %48 = vmatprep.subr.mxu0 0.0
    %49 = vmatpush1.msra.mxu0 0.0
    %50 = vmatprep.subr.mxu0 0.0
    %51 = vmatpush1.msra.mxu0 0.0
    %52 = vmatprep.subr.mxu0 0.0
    %53 = vmatpush1.msra.mxu0 0.0
    %54 = vmatprep.subr.mxu0 0.0
    %55 = vmatpush1.msra.mxu0 0.0
    %56 = vmatprep.subr.mxu0 0.0
    %57 = vmatpush1.msra.mxu0 0.0
    %58 = vmatprep.subr.mxu0 0.0
    %59 = vmatpush1.msra.mxu0 0.0
    %60 = vmatprep.subr.mxu0 0.0
    %61 = vmatpush1.msra.mxu0 0.0
    %62 = vmatprep.subr.mxu0 0.0
    %63 = vmatpush1.msra.mxu0 0.0
    %64 = vmatprep.subr.mxu0 0.0
    %65 = vmatpush1.msra.mxu0 0.0
    %66 = vmatprep.subr.mxu0 0.0
    %67 = vmatpush1.msra.mxu0 0.0
    %68 = vmatprep.subr.mxu0 0.0
    %69 = vmatpush1.msra.mxu0 0.0
    %70 = vmatprep.subr.mxu0 0.0
    %71 = vmatpush1.msra.mxu0 0.0
    %72 = vmatprep.subr.mxu0 0.0
    %73 = vmatpush1.msra.mxu0 0.0
    %74 = vmatprep.subr.mxu0 0.0
    %75 = vmatpush1.msra.mxu0 0.0
    %76 = vmatprep.subr.mxu0 0.0
    %77 = vmatpush1.msra.mxu0 0.0
    %78 = vmatprep.subr.mxu0 0.0
    %79 = vmatpush1.msra.mxu0 0.0
    %80 = vmatprep.subr.mxu0 0.0
    %81 = vmatpush1.msra.mxu0 0.0
    %82 = vmatprep.subr.mxu0 0.0
    %83 = vmatpush1.msra.mxu0 0.0
    %84 = vmatprep.subr.mxu0 0.0
    %85 = vmatpush1.msra.mxu0 0.0
    %86 = vmatprep.subr.mxu0 0.0
    %87 = vmatpush1.msra.mxu0 0.0
    %88 = vmatprep.mubr.f32.mxu0 0.0
    %89 = vmatmul.mubr.f32.gmra.mrb[0].mxu0 %v22
    %v90 = vpop.f32.mrb[0].mxu0
    %v91 = vadd.f32 0.0, %v90
    %v92 = vpop.f32.mrb[0].mxu0
    %93 = vdwg.mxu0
    %vm94 = vcmask 31744
    %95 = vst.msk [vmem:[%s2] sm:$0xff] %vm94, %v91
    %v96 = vsel %vm94, %v91, -inf
    %97 = vmax.xlane.f32.xlu0 %v96
    %v98 = vpop.xlane.xlu0 %97
    %v99 = vsub.f32 %v91, %v98
    %v100 = vmul.f32 %v99, 1.442695
    %v101 = vpow.pop %v100
    %v102 = vsel %vm94, %v101, 0.0
    %103 = vadd.xlane.f32.xlu0 %v102
    %v104 = vpop.xlane.xlu0 %103
    %v105 = vrcp.pop %v104
    %v106 = vmul.f32 %v101, %v105
    %v107 = vlaneseq
    %v108 = vand.u32 %v107, 127
    %v109 = vsel %vm94, %v106, -inf
    %110 = vmax.xlane.f32.xlu0 %v109
    %v111 = vpop.xlane.xlu0 %110
    %vm112 = vcmp.eq.f32.partialorder %v106, %v111
    %v113 = vsel %vm112, %v108, 4
    %v114 = vsel %vm94, %v113, 2147483647
    %v115 = vand.u32 %v114, 65535
    %v116 = vshra.s32 %v114, 16
    %v117 = vcvt.s32.f32 %v115
    %v118 = vcvt.s32.f32 %v116
    %119 = vmin.xlane.f32.xlu0 %v118
    %v120 = vpop.xlane.xlu0 %119
    %vm121 = vcmp.eq.f32.partialorder %v118, %v120
    %v122 = vsel %vm121, %v117, inf
    %123 = vmin.xlane.f32.xlu0 %v122
    %v124 = vpop.xlane.xlu0 %123
    %v125 = vcvt.f32.s32 %v124
    %v126 = vcvt.f32.s32 %v120
    %v127 = vshll.u32 %v126, 16
    %v128 = vadd.s32 %v127, %v125
    %vm129 = vcmp.eq.s32.totalorder %v108, %v128
    %v130 = vsel %vm129, 1, 0
    %v131 = vcvt.s32.f32 %v130
    %p132 = scmp.eq.s32.totalorder 0, 0
    // Predicated region
    $region10: #{top2gate.3} parent=1 // pred_check
      %p133 = pneg %p132
    $region11: #{top2gate.3} parent=1 // pred_check_branch
      %135 = sbr.rel (%p133) target = $region13
    $region12: #{top2gate.3} parent=1 // pred_region
      %vm136 = vcmask 24576
      %137 = vst.msk [vmem:[#allocation2] sm:$0x1] %vm136, 0.0
      %138 = vst.msk [vmem:[#allocation3] sm:$0x1] %vm136, 0.0
    $region13: #{top2gate.3} parent=1 // pred_fallthru
      _
    %v139 = vld [vmem:[#allocation2] sm:$0x1]
    %v140 = vsel %vm94, %v131, 0.0
    %v141 = vrot.slane %v140, 4
    %v142 = vadd.f32 %v140, %v141
    %v143 = vrot.slane %v142, 2
    %v144 = vadd.f32 %v142, %v143
    %v145 = vrot.slane %v144, 1
    %v146 = vadd.f32 %v144, %v145
    %v147 = vadd.f32 %v139, %v146
    %vm148 = vcmask 24576
    %149 = vst.msk [vmem:[#allocation2] sm:$0x1] %vm148, %v147
    %v150 = vld [vmem:[#allocation3] sm:$0x1]
    %v151 = vsel %vm94, %v106, 0.0
    %v152 = vrot.slane %v151, 4
    %v153 = vadd.f32 %v151, %v152
    %v154 = vrot.slane %v153, 2
    %v155 = vadd.f32 %v153, %v154
    %v156 = vrot.slane %v155, 1
    %v157 = vadd.f32 %v155, %v156
    %v158 = vadd.f32 %v150, %v157
    %159 = vst.msk [vmem:[#allocation3] sm:$0x1] %vm148, %v158
    // Predicated region
    $region14: #{top2gate.3} parent=1 // pred_check
      %p160 = pneg %p132
    $region15: #{top2gate.3} parent=1 // pred_check_branch
      %162 = sbr.rel (%p160) target = $region17
    $region16: #{top2gate.3} parent=1 // pred_region
      %v163 = vld [vmem:[#allocation2] sm:$0x1]
      %164 = vst.msk [vmem:[%s3] sm:$0x1] %vm148, %v163
      %v165 = vld [vmem:[#allocation3] sm:$0x1]
      %v166 = vmul.f32 %v165, 0.125
      %v167 = vld [vmem:[#allocation2] sm:$0x1]
      %v168 = vmul.f32 %v167, 0.125
      %v169 = vmul.f32 %v166, %v168
      %v170 = vsel %vm148, %v169, 0.0
      %171 = vadd.xlane.f32.xlu0 %v170
      %v172 = vpop.xlane.xlu0 %171
      %v173 = vrcp.pop 4.0
      %v174 = vmul.f32 %v172, %v173
      %vm175 = vcmask 0
      %176 = vst.msk [vmem:[#allocation4] sm:$0x1] %vm175, %v174
    $region17: #{top2gate.3} parent=1 // pred_fallthru
      _
    // Predicated region
    $region18: #{top2gate.3} parent=1 // pred_check
      _
    $region19: #{top2gate.3} parent=1 // pred_check_branch
      %178 = sbr.rel (0) target = $region21
    $region20: #{top2gate.3} parent=1 // pred_region
      _
    $region21: #{top2gate.3} parent=1 // pred_fallthru
      _
    // Predicated region
    $region22: #{top2gate.3} parent=1 // pred_check
      _
    $region23: #{top2gate.3} parent=1 // pred_check_branch
      %180 = sbr.rel (0) target = $region25
    $region24: #{top2gate.3} parent=1 // pred_region
      _
    $region25: #{top2gate.3} parent=1 // pred_fallthru
      _
    // Predicated region
    $region26: #{top2gate.3} parent=1 // pred_check
      _
    $region27: #{top2gate.3} parent=1 // pred_check_branch
      %182 = sbr.rel (0) target = $region29
    $region28: #{top2gate.3} parent=1 // pred_region
      %s184 = ssub.s32 16, 16
      %185 = vsyncadd [#allocation5], %s184
      %s187 = sshll.u32 [#allocation4], 4
      %s188 = int_to_ptr.vmem [resolvable:$true] %s187
      %190 = dma.vmem_to_hbm [thread:$0]  %s188, 16, %s4, [#allocation5]
    $region29: #{top2gate.3} parent=1 // pred_fallthru
      _
    // Predicated region
    $region30: #{top2gate.3} parent=1 // pred_check
      _
    $region31: #{top2gate.3} parent=1 // pred_check_branch
      %192 = sbr.rel (0) target = $region33
    $region32: #{top2gate.3} parent=1 // pred_region
      _
    $region33: #{top2gate.3} parent=1 // pred_fallthru
      _
    // Predicated region
    $region34: #{top2gate.3} parent=1 // pred_check
      _
    $region35: #{top2gate.3} parent=1 // pred_check_branch
      %194 = sbr.rel (0) target = $region37
    $region36: #{top2gate.3} parent=1 // pred_region
      _
    $region37: #{top2gate.3} parent=1 // pred_fallthru
      _
    // Predicated region
    $region38: #{top2gate.3} parent=1 // pred_check
      _
    $region39: #{top2gate.3} parent=1 // pred_check_branch
      %196 = sbr.rel (0) target = $region41
    $region40: #{top2gate.3} parent=1 // pred_region
      %197 = dma.done [#allocation5], 16
    $region41: #{top2gate.3} parent=1 // pred_fallthru
      _
    %198 = vsyncpa [#allocation5], 1

// kernel: top2gate.4
$region0: #{top2gate.4}
  #allocation0 [shape = 'u32[]', space=smem, size = 0x4, offset = 0x4, fixed_abs, tag = 'smem constant byte address 0x4 - core index']
  #allocation1 [shape = 'u32[144,128]{1,0:T(1,128)}', space=vmem, size = 0x12000, scoped, tag = 'internal scratch']
  #allocation2 [shape = 'f32[1,8]{1,0:T(1,128)}', space=vmem, size = 0x200, scoped, tag = 'scratch operand']
  %s0 = inlined_call_operand.vmem [shape: f32[8,4], index: 0, kind: input, shape index: {}]
  %s1 = inlined_call_operand.vmem [shape: f32[8,4], index: 1, kind: input, shape index: {}]
  %s2 = inlined_call_operand.vmem [shape: f32[1,4], index: 2, kind: input, shape index: {}]
  %s3 = inlined_call_operand.vmem [shape: f32[8,8], index: 3, kind: output, shape index: {0}]
  %s4 = inlined_call_operand.vmem [shape: s32[8,8], index: 4, kind: output, shape index: {1}]
  %5 = xla_tuple %s3, %s4
  %s6 = sld [smem:[#allocation0]]
  $region34: #{top2gate.4} parent=0
    _
  %s8 = ssub.s32 1, %s6
  %s9 = scalar_select 0, %s8, %s6
  // Predicated region
  $region2: #{top2gate.4} parent=0 // pred_check
    _
  $region3: #{top2gate.4} parent=0 // pred_check_branch
    %11 = sbr.rel (0) target = $region5
  $region4: #{top2gate.4} parent=0 // pred_region
    _
  $region5: #{top2gate.4} parent=0 // pred_fallthru
    _
  // Predicated region
  $region6: #{top2gate.4} parent=0 // pred_check
    _
  $region7: #{top2gate.4} parent=0 // pred_check_branch
    %13 = sbr.rel (0) target = $region9
  $region8: #{top2gate.4} parent=0 // pred_region
    _
  $region9: #{top2gate.4} parent=0 // pred_fallthru
    _
  // Predicated region
  $region10: #{top2gate.4} parent=0 // pred_check
    _
  $region11: #{top2gate.4} parent=0 // pred_check_branch
    %15 = sbr.rel (0) target = $region13
  $region12: #{top2gate.4} parent=0 // pred_region
    _
  $region13: #{top2gate.4} parent=0 // pred_fallthru
    _
  %v17 = vld [vmem:[%s0] sm:$0xff]
  %v18 = vld [vmem:[%s2] sm:$0x1]
  %vm19 = vcmask 31744
  %v20 = vsel %vm19, %v17, -inf
  %21 = vmax.xlane.f32.xlu0 %v20
  %v22 = vpop.xlane.xlu0 %21
  %v23 = vsub.f32 %v17, %v22
  %v24 = vmul.f32 %v23, 1.442695
  %v25 = vpow.pop %v24
  %v26 = vsel %vm19, %v25, 0.0
  %27 = vadd.xlane.f32.xlu0 %v26
  %v28 = vpop.xlane.xlu0 %27
  %v29 = vrcp.pop %v28
  %v30 = vmul.f32 %v25, %v29
  %v31 = vlaneseq
  %v32 = vand.u32 %v31, 127
  %v33 = vsel %vm19, %v30, -inf
  %34 = vmax.xlane.f32.xlu0 %v33
  %v35 = vpop.xlane.xlu0 %34
  %vm36 = vcmp.eq.f32.partialorder %v30, %v35
  %v37 = vsel %vm36, %v32, 4
  %v38 = vsel %vm19, %v37, 2147483647
  %v39 = vand.u32 %v38, 65535
  %v40 = vshra.s32 %v38, 16
  %v41 = vcvt.s32.f32 %v39
  %v42 = vcvt.s32.f32 %v40
  %43 = vmin.xlane.f32.xlu0 %v42
  %v44 = vpop.xlane.xlu0 %43
  %vm45 = vcmp.eq.f32.partialorder %v42, %v44
  %v46 = vsel %vm45, %v41, inf
  %47 = vmin.xlane.f32.xlu0 %v46
  %v48 = vpop.xlane.xlu0 %47
  %v49 = vcvt.f32.s32 %v48
  %v50 = vcvt.f32.s32 %v44
  %v51 = vshll.u32 %v50, 16
  %v52 = vadd.s32 %v51, %v49
  %vm53 = vcmp.eq.s32.totalorder %v32, %v52
  %v54 = vsel %vm53, 1, 0
  %v55 = vcvt.s32.f32 %v54
  %v56 = vld [vmem:[%s1] sm:$0xff]
  %v57 = vadd.f32 %v17, %v56
  %v58 = vsel %vm53, -inf, %v57
  %v59 = vsel %vm19, %v58, -inf
  %60 = vmax.xlane.f32.xlu0 %v59
  %v61 = vpop.xlane.xlu0 %60
  %vm62 = vcmp.eq.f32.partialorder %v58, %v61
  %v63 = vsel %vm62, %v32, 4
  %v64 = vsel %vm19, %v63, 2147483647
  %v65 = vand.u32 %v64, 65535
  %v66 = vshra.s32 %v64, 16
  %v67 = vcvt.s32.f32 %v65
  %v68 = vcvt.s32.f32 %v66
  %69 = vmin.xlane.f32.xlu0 %v68
  %v70 = vpop.xlane.xlu0 %69
  %vm71 = vcmp.eq.f32.partialorder %v68, %v70
  %v72 = vsel %vm71, %v67, inf
  %73 = vmin.xlane.f32.xlu0 %v72
  %v74 = vpop.xlane.xlu0 %73
  %v75 = vcvt.f32.s32 %v74
  %v76 = vcvt.f32.s32 %v70
  %v77 = vshll.u32 %v76, 16
  %v78 = vadd.s32 %v77, %v75
  %vm79 = vcmp.eq.s32.totalorder %v32, %v78
  %v80 = vsel %vm79, 1, 0
  %v81 = vcvt.s32.f32 %v80
  %p82 = scmp.eq.s32.totalorder 0, 0
  // Predicated region
  $region14: #{top2gate.4} parent=0 // pred_check
    %p83 = pneg %p82
  $region15: #{top2gate.4} parent=0 // pred_check_branch
    %85 = sbr.rel (%p83) target = $region17
  $region16: #{top2gate.4} parent=0 // pred_region
    %vm86 = vcmask 57344
    %87 = vst.msk [vmem:[#allocation2] sm:$0x1] %vm86, 0.0
  $region17: #{top2gate.4} parent=0 // pred_fallthru
    _
  %v88 = vadd.s32 %v78, 4
  %vm89 = vcmp.eq.s32.totalorder %v32, %v88
  %vm90 = vmor %vm53, %vm89
  %v91 = vsel %vm90, 1, 0
  %v92 = vcvt.s32.f32 %v91
  %v93 = vpack.c.bf16 %v92, %v92
  %v94 = vlaneseq
  %v95 = vshrl.u32 %v94, 7
  %vm96 = vcmp.ge.s32.totalorder %v95, %v32
  %v97 = vsel %vm96, 1, 0
  %v98 = vcvt.s32.f32 %v97
  %v99 = vpack.c.bf16 %v98, %v98
  %v100 = vld [vmem:[#allocation2] sm:$0x1]
  %vm101 = vcmask 64512
  %v103 = vsel %vm101, %v99, 0
  %vm105 = vcmask 1043456
  %v107 = vsel %vm105, %v93, 0
  %109 = vmatprep.subr.bf16.mxu0 0
  %110 = vmatpush1.bf16.msra.mxu0 %v107
  %111 = vmatprep.subr.bf16.mxu0 0
  %112 = vmatpush1.bf16.msra.mxu0 0
  %113 = vmatprep.subr.bf16.mxu0 0
  %114 = vmatpush1.bf16.msra.mxu0 0
  %115 = vmatprep.subr.bf16.mxu0 0
  %116 = vmatpush1.bf16.msra.mxu0 0
  %117 = vmatprep.subr.bf16.mxu0 0
  %118 = vmatpush1.bf16.msra.mxu0 0
  %119 = vmatprep.subr.bf16.mxu0 0
  %120 = vmatpush1.bf16.msra.mxu0 0
  %121 = vmatprep.subr.bf16.mxu0 0
  %122 = vmatpush1.bf16.msra.mxu0 0
  %123 = vmatprep.subr.bf16.mxu0 0
  %124 = vmatpush1.bf16.msra.mxu0 0
  %125 = vmatprep.subr.bf16.mxu0 0
  %126 = vmatpush1.bf16.msra.mxu0 0
  %127 = vmatprep.subr.bf16.mxu0 0
  %128 = vmatpush1.bf16.msra.mxu0 0
  %129 = vmatprep.subr.bf16.mxu0 0
  %130 = vmatpush1.bf16.msra.mxu0 0
  %131 = vmatprep.subr.bf16.mxu0 0
  %132 = vmatpush1.bf16.msra.mxu0 0
  %133 = vmatprep.subr.bf16.mxu0 0
  %134 = vmatpush1.bf16.msra.mxu0 0
  %135 = vmatprep.subr.bf16.mxu0 0
  %136 = vmatpush1.bf16.msra.mxu0 0
  %137 = vmatprep.subr.bf16.mxu0 0
  %138 = vmatpush1.bf16.msra.mxu0 0
  %139 = vmatprep.subr.bf16.mxu0 0
  %140 = vmatpush1.bf16.msra.mxu0 0
  %141 = vmatprep.mubr.bf16.mxu0 0
  %142 = vmatmul.mubr.bf16.gmra.mrb[0].mxu0 %v103
  %v143 = vpop.f32.mrb[0].mxu0
  %v144 = vadd.f32 0.0, %v143
  %v145 = vpop.f32.mrb[0].mxu0
  %v146 = vpop.f32.mrb[0].mxu0
  %v147 = vpop.f32.mrb[0].mxu0
  %148 = vdwg.mxu0
  %v149 = vsub.f32 %v144, 1.0
  %v151 = vlaneseq
  %v152 = vshrl.u32 %v151, 7
  %v153 = vsub.s32 0, %v152
  %v154 = vrot.slane %v100, %v153
  %v156 = vadd.f32 %v149, %v154
  %v157 = vunpack.c.l.bf16 %v93
  %v158 = vsel %vm101, %v157, 0.0
  %v159 = vrot.slane %v158, 4
  %v160 = vadd.f32 %v158, %v159
  %v161 = vrot.slane %v160, 2
  %v162 = vadd.f32 %v160, %v161
  %v163 = vrot.slane %v162, 1
  %v164 = vadd.f32 %v162, %v163
  %v165 = vadd.f32 %v100, %v164
  %vm166 = vcmask 57344
  %167 = vst.msk [vmem:[#allocation2] sm:$0x1] %vm166, %v165
  %v169 = vlaneseq
  %v170 = vshrl.u32 %v169, 7
  %v171 = vsub.s32 0, %v170
  %v172 = vrot.slane %v18, %v171
  %173 = vrot.lane.b32.xlu0 %v172, 4
  %v174 = vpop.permute.xlu0 %173
  %v176 = vadd.f32 %v156, %v174
  %vm177 = vcmp.lt.f32.partialorder %v156, 16.0
  %v178 = vsel %vm177, 1, 0
  %v179 = vcvt.s32.f32 %v178
  %v180 = vmul.f32 %v55, %v179
  %vm181 = vcmp.lt.f32.partialorder %v176, 16.0
  %v182 = vsel %vm181, 1, 0
  %v183 = vcvt.s32.f32 %v182
  %185 = vrot.lane.b32.xlu0 %v183, 124
  %v186 = vpop.permute.xlu0 %185
  %v188 = vmul.f32 %v81, %v186
  %v189 = vmul.f32 %v156, %v180
  %v190 = vsel %vm19, %v189, 0.0
  %191 = vadd.xlane.f32.xlu0 %v190
  %v192 = vpop.xlane.xlu0 %191
  %194 = vrot.lane.b32.xlu0 %v188, 4
  %v195 = vpop.permute.xlu0 %194
  %v197 = vmul.f32 %v176, %v195
  %199 = vrot.lane.b32.xlu0 %v197, 124
  %v200 = vpop.permute.xlu0 %199
  %v202 = vsel %vm19, %v200, 0.0
  %203 = vadd.xlane.f32.xlu0 %v202
  %v204 = vpop.xlane.xlu0 %203
  %v205 = vmul.f32 %v30, %v180
  %v206 = vsel %vm19, %v205, 0.0
  %207 = vadd.xlane.f32.xlu0 %v206
  %v208 = vpop.xlane.xlu0 %207
  %v209 = vmul.f32 %v30, %v188
  %v210 = vsel %vm19, %v209, 0.0
  %211 = vadd.xlane.f32.xlu0 %v210
  %v212 = vpop.xlane.xlu0 %211
  %v213 = vadd.f32 %v208, %v212
  %v214 = vmax.f32 %v213, 1.1920929e-07
  %v215 = vrcp.pop %v214
  %v216 = vmul.f32 %v208, %v215
  %v217 = vmul.f32 %v212, %v215
  %v218 = vmul.u32 %v52, 16
  %v219 = vcvt.f32.s32.to.zero.pseudo %v192
  %v220 = vadd.s32 %v218, %v219
  %v221 = vmul.u32 %v78, 16
  %v222 = vcvt.f32.s32.to.zero.pseudo %v204
  %v223 = vadd.s32 %v221, %v222
  %vm224 = vcmp.eq.s32.totalorder %v32, 0
  %v225 = vsel %vm224, %v216, 0.0
  %vm226 = vcmp.eq.s32.totalorder %v32, 1
  %v227 = vsel %vm226, %v217, 0.0
  %v228 = vadd.f32 %v225, %v227
  %229 = vst.msk [vmem:[%s3] sm:$0xff] %vm101, %v228
  %v230 = vsel %vm224, %v220, 0
  %v231 = vsel %vm226, %v223, 0
  %v232 = vadd.s32 %v230, %v231
  %233 = vst.msk [vmem:[%s4] sm:$0xff] %vm101, %v232
  // Predicated region
  $region18: #{top2gate.4} parent=0 // pred_check
    _
  $region19: #{top2gate.4} parent=0 // pred_check_branch
    %235 = sbr.rel (0) target = $region21
  $region20: #{top2gate.4} parent=0 // pred_region
    _
  $region21: #{top2gate.4} parent=0 // pred_fallthru
    _
  // Predicated region
  $region22: #{top2gate.4} parent=0 // pred_check
    _
  $region23: #{top2gate.4} parent=0 // pred_check_branch
    %237 = sbr.rel (0) target = $region25
  $region24: #{top2gate.4} parent=0 // pred_region
    _
  $region25: #{top2gate.4} parent=0 // pred_fallthru
    _
  // Predicated region
  $region26: #{top2gate.4} parent=0 // pred_check
    _
  $region27: #{top2gate.4} parent=0 // pred_check_branch
    %239 = sbr.rel (0) target = $region29
  $region28: #{top2gate.4} parent=0 // pred_region
    _
  $region29: #{top2gate.4} parent=0 // pred_fallthru
    _
  // Predicated region
  $region30: #{top2gate.4} parent=0 // pred_check
    _
  $region31: #{top2gate.4} parent=0 // pred_check_branch
    %241 = sbr.rel (0) target = $region33
  $region32: #{top2gate.4} parent=0 // pred_region
    _
  $region33: #{top2gate.4} parent=0 // pred_fallthru
    _

</llo_original>
